<compile_context>
chip_gen: v6e
topology: v6e:2x2x1
jax: 0.10.0
libtpu: 0.0.40
codegen_flags: <defaults>
</compile_context>

<pallas_src>
import functools
import math

import jax
import jax.numpy as jnp
from jax import lax
from jax.experimental import pallas as pl
from jax.experimental.pallas import tpu as pltpu

EPS = 1e-12          # layer_norm_eps default of the module
MASK_NEG = -1e9      # finite additive mask value (avoids NaN for fully-masked rows)


# --------------------------------------------------------------------- in-kernel helpers
def _layer_norm(x, g, b, eps):
    mu = jnp.mean(x, axis=-1, keepdims=True)
    var = jnp.mean(jnp.square(x - mu), axis=-1, keepdims=True)
    return (x - mu) * lax.rsqrt(var + eps) * g + b


def _gelu(x):
    # TODO(synk): PyTorch F.gelu defaults to the exact erf form; erf lowering is not
    # guaranteed in Mosaic, so the tanh approximation is used here.
    c = math.sqrt(2.0 / math.pi)
    return 0.5 * x * (1.0 + jnp.tanh(c * (x + 0.044715 * x * x * x)))


# --------------------------------------------------------------------------- kernels
def embed_ln_kernel(emb_ref, g_ref, b_ref, out_ref):
    """LayerNorm over the pre-summed (word + position + token_type) embedding tile."""
    out_ref[0] = _layer_norm(emb_ref[0].astype(jnp.float32),
                             g_ref[...], b_ref[...], EPS).astype(out_ref.dtype)


def ln_qkv_kernel(x_ref, g_ref, b_ref, w_ref, bias_ref, q_ref, k_ref, v_ref):
    """Pre-norm + fused QKV projection for one (batch, seq-tile) block.

    w_ref: (H, 3H) bf16, pre-transposed (contraction dim on sublanes) with the
    1/sqrt(head_dim) scale folded into the Q columns.  f32 MXU accumulation.
    Q/K/V are emitted as three lane-dense (TS, H) bf16 tiles (no XLA head split).
    """
    H = q_ref.shape[-1]
    xn = _layer_norm(x_ref[0].astype(jnp.float32), g_ref[...], b_ref[...], EPS)
    y = jnp.dot(xn.astype(jnp.bfloat16), w_ref[...],
                preferred_element_type=jnp.float32) + bias_ref[...]
    q_ref[0] = y[:, :H].astype(q_ref.dtype)
    k_ref[0] = y[:, H:2 * H].astype(k_ref.dtype)
    v_ref[0] = y[:, 2 * H:].astype(v_ref.dtype)


def attention_kernel(q_ref, k_ref, v_ref, mask_ref, o_ref, *, head_dim):
    """Attention for one (batch element, head group).

    q/k/v refs are lane-dense (1, S, group_heads*HD) bf16 column slices of the
    (B, S, H) slabs; the per-head contexts are merged in-kernel and written as one
    lane-dense tile.  The softmax scale is already folded into Q.
    """
    # TODO(synk): for long sequences (S >> 512) this should become a KV-tiled
    # online-softmax (flash) kernel; full S x S scores are fine at these sizes.
    n_heads = q_ref.shape[-1] // head_dim
    mask = mask_ref[0]                       # (1, S) additive, broadcast over queries
    ctx_heads = []
    for h in range(n_heads):                 # static unroll over the small head group
        sl = slice(h * head_dim, (h + 1) * head_dim)
        q = q_ref[0, :, sl]                  # (S, HD) bf16
        k = k_ref[0, :, sl]
        v = v_ref[0, :, sl]
        s = lax.dot_general(q, k, (((1,), (1,)), ((), ())),
                            preferred_element_type=jnp.float32) + mask      # (S, S)
        m = jnp.max(s, axis=-1, keepdims=True)
        p = jnp.exp(s - m)
        l = jnp.sum(p, axis=-1, keepdims=True)            # >= 1 (finite mask)
        ctx = jnp.dot(p.astype(jnp.bfloat16), v, preferred_element_type=jnp.float32)
        ctx_heads.append(ctx * pl.reciprocal(l, approx=True))
    o_ref[0] = jnp.concatenate(ctx_heads, axis=-1).astype(o_ref.dtype)   # lane-dense


def attn_out_ffn_kernel(x_ref, ctx_ref, wo_ref, bo_ref, g2_ref, b2_ref,
                        w1_ref, c1_ref, w2_ref, c2_ref, out_ref):
    """Attention output projection + residual + pre-norm FFN + residual (one tile)."""
    x = x_ref[0].astype(jnp.float32)
    x = x + jnp.dot(ctx_ref[0], wo_ref[...],
                    preferred_element_type=jnp.float32) + bo_ref[...]
    xn = _layer_norm(x, g2_ref[...], b2_ref[...], EPS)
    h = jnp.dot(xn.astype(jnp.bfloat16), w1_ref[...],
                preferred_element_type=jnp.float32) + c1_ref[...]
    h = _gelu(h)
    y = jnp.dot(h.astype(jnp.bfloat16), w2_ref[...],
                preferred_element_type=jnp.float32) + c2_ref[...]
    out_ref[0] = (x + y).astype(out_ref.dtype)


# --------------------------------------------------------------------------- tiling helpers
def _seq_tiling(S):
    """(seq tile, padded length): tile <= 256, sequence padded to a tile multiple."""
    if S <= 256:
        ts = ((S + 7) // 8) * 8
        return ts, ts
    # TODO(synk): 512 is also fine on v5e/v6e (128 MiB VMEM); 256 fits v7x's 64 MiB.
    ts = 256
    return ts, ((S + ts - 1) // ts) * ts


def _pick_head_group(NH, HD):
    """Smallest divisor head group whose lane width (hpg*HD) is a multiple of 128."""
    for hpg in range(1, NH + 1):
        if NH % hpg == 0 and (hpg * HD) % 128 == 0:
            return hpg
    return NH            # tiny models: the whole hidden dim is one lane-dense slab


def _vmem_limit(nbytes):
    """Explicit scoped-VMEM request: footprint + headroom, clamped to safe bounds."""
    return int(min(max(int(nbytes * 1.5), 32 << 20), 56 << 20))


def _cparams(n_axes, nbytes):
    # TODO(synk): on v7x verify with a profile that "parallel" axes shard across the
    # two TensorCores; switch to pltpu.CORE_PARALLEL on a leading axis if they don't.
    return pltpu.CompilerParams(dimension_semantics=("parallel",) * n_axes,
                                vmem_limit_bytes=_vmem_limit(nbytes))


# ---- single-buffered weight specs (pipeline_mode=pl.Buffered(1)), feature-probed ----
_single_buffer_ok = None


def _single_buffer_weights_supported():
    global _single_buffer_ok
    if _single_buffer_ok is None:
        def copy_kernel(x_ref, o_ref):
            o_ref[...] = x_ref[...]
        try:
            spec = pl.BlockSpec((8, 128), lambda i: (0, 0),
                                pipeline_mode=pl.Buffered(buffer_count=1))
            y = pl.pallas_call(
                copy_kernel,
                out_shape=jax.ShapeDtypeStruct((8, 128), jnp.float32),
                grid=(2,),
                in_specs=[spec],
                out_specs=pl.BlockSpec((8, 128), lambda i: (0, 0)),
            )(jnp.zeros((8, 128), jnp.float32))
            jax.block_until_ready(y)
            _single_buffer_ok = True
        except Exception:
            _single_buffer_ok = False
    return _single_buffer_ok


def _weight_spec(shape):
    """Constant-index-map weight spec; single-buffered where supported (halves the
    weight VMEM footprint on v7x; zero perf cost since weights are fetched once)."""
    index_map = lambda b, s: (0, 0)
    if _single_buffer_weights_supported():
        return pl.BlockSpec(shape, index_map,
                            pipeline_mode=pl.Buffered(buffer_count=1))
    return pl.BlockSpec(shape, index_map)


# --------------------------------------------------------------------------- weight prep
def prepare_params(params):
    """One-time (load-time) weight prep: transpose to (K, N), cast to bf16, concat QKV,
    fold 1/sqrt(head_dim) into Q, cast embedding tables to bf16."""
    NH = params["num_heads"]
    H = params["word_embeddings"].shape[1]
    HD = H // NH
    scale = 1.0 / math.sqrt(HD)
    layers = []
    for layer in params["layers"]:
        w_qkv = jnp.concatenate(
            [layer["wq"].T * scale, layer["wk"].T, layer["wv"].T], axis=1
        ).astype(jnp.bfloat16)                                            # (H, 3H)
        b_qkv = jnp.concatenate([layer["bq"] * scale, layer["bk"], layer["bv"]], axis=1)
        layers.append(dict(
            w_qkv=w_qkv, b_qkv=b_qkv,
            wo=layer["wo"].T.astype(jnp.bfloat16), bo=layer["bo"],
            w1=layer["w1"].T.astype(jnp.bfloat16), b1=layer["b1"],
            w2=layer["w2"].T.astype(jnp.bfloat16), b2=layer["b2"],
            ln1_g=layer["ln1_g"], ln1_b=layer["ln1_b"],
            ln2_g=layer["ln2_g"], ln2_b=layer["ln2_b"],
        ))
    return dict(
        num_heads=NH, hidden_size=H,
        intermediate_size=params["layers"][0]["w1"].shape[0],
        word_embeddings=params["word_embeddings"].astype(jnp.bfloat16),
        position_embeddings=params["position_embeddings"].astype(jnp.bfloat16),
        token_type_embeddings=params["token_type_embeddings"].astype(jnp.bfloat16),
        emb_ln_g=params["emb_ln_g"], emb_ln_b=params["emb_ln_b"],
        pooler_w=params["pooler_w"], pooler_b=params["pooler_b"],
        layers=layers,
    )


# --------------------------------------------------------------------------- forward
def medical_adapter_forward(prepped, input_ids, attention_mask=None,
                            token_type_ids=None, position_ids=None):
    B, S = input_ids.shape
    H = prepped["hidden_size"]
    NH = prepped["num_heads"]
    HD = H // NH
    I = prepped["intermediate_size"]

    TS, S_pad = _seq_tiling(S)
    n_s = S_pad // TS
    HPG = _pick_head_group(NH, HD)
    LG = HPG * HD
    n_g = NH // HPG

    if position_ids is None:
        position_ids = jnp.broadcast_to(jnp.arange(S, dtype=jnp.int32)[None, :], (B, S))
    if token_type_ids is None:
        token_type_ids = jnp.zeros((B, S), jnp.int32)
    if attention_mask is None:
        attention_mask = jnp.ones((B, S), jnp.float32)

    # Embedding gathers + sum are XLA glue (bf16 tables, f32 sum, bf16 slab in HBM).
    emb = (prepped["word_embeddings"][input_ids].astype(jnp.float32)
           + prepped["position_embeddings"][position_ids].astype(jnp.float32)
           + prepped["token_type_embeddings"][token_type_ids].astype(jnp.float32)
           ).astype(jnp.bfloat16)

    # HF-style extended attention mask, finite negative (avoids -inf / NaN rows).
    ext_mask = ((1.0 - attention_mask.astype(jnp.float32)) * MASK_NEG).reshape(B, 1, S)

    if S_pad != S:     # pad to the seq-tile multiple; padded keys are masked out
        emb = jnp.pad(emb, ((0, 0), (0, S_pad - S), (0, 0)))
        ext_mask = jnp.pad(ext_mask, ((0, 0), (0, 0), (0, S_pad - S)),
                           constant_values=MASK_NEG)

    # ----- shared BlockSpecs -----
    tok_spec = pl.BlockSpec((1, TS, H), lambda b, s: (b, s, 0))
    row_h = pl.BlockSpec((1, H), lambda b, s: (0, 0))
    b_qkv_spec = pl.BlockSpec((1, 3 * H), lambda b, s: (0, 0))
    b1_spec = pl.BlockSpec((1, I), lambda b, s: (0, 0))
    w_qkv_spec = _weight_spec((H, 3 * H))
    wo_spec = _weight_spec((H, H))
    w1_spec = _weight_spec((H, I))
    w2_spec = _weight_spec((I, H))
    head_spec = pl.BlockSpec((1, S_pad, LG), lambda b, g: (b, 0, g))
    mask_spec = pl.BlockSpec((1, 1, S_pad), lambda b, g: (b, 0, 0))

    # ----- per-kernel VMEM footprints (weights 1x, activation tiles 2x buffered) -----
    tok_bytes = TS * H * 2
    vmem_embed = 4 * tok_bytes + 8 * H
    vmem_qkv = (2 * tok_bytes + 6 * H * H * 2 + 12 * H
                + 6 * 2 * tok_bytes + TS * 3 * H * 4)
    vmem_attn = 8 * S_pad * LG * 2 + 2 * HPG * S_pad * S_pad * 4 + 2 * S_pad * 4
    vmem_ffn = (6 * tok_bytes + (H * H + 2 * H * I) * 2 + (I + 3 * H) * 4
                + TS * (I + H) * 4)

    # ----- embeddings: LayerNorm over (batch, seq-tile) grid -----
    hidden = pl.pallas_call(
        embed_ln_kernel,
        out_shape=jax.ShapeDtypeStruct((B, S_pad, H), jnp.bfloat16),
        grid_spec=pltpu.PrefetchScalarGridSpec(
            num_scalar_prefetch=0, grid=(B, n_s),
            in_specs=[tok_spec, row_h, row_h],
            out_specs=tok_spec),
        compiler_params=_cparams(2, vmem_embed),
    )(emb, prepped["emb_ln_g"], prepped["emb_ln_b"])
    # hidden_dropout: identity at inference.

    # ----- encoder layers (pre-norm, matching norm_first=True) -----
    # TODO(synk): optional further fusion of ln_qkv + attention + attn_out_ffn into a
    # single per-batch kernel (removes the q/k/v/ctx HBM round trips on v5e/v6e).
    for lw in prepped["layers"]:
        # pre-norm + fused QKV projection; Q/K/V emitted as lane-dense (B, S, H) bf16
        q, k, v = pl.pallas_call(
            ln_qkv_kernel,
            out_shape=(jax.ShapeDtypeStruct((B, S_pad, H), jnp.bfloat16),) * 3,
            grid_spec=pltpu.PrefetchScalarGridSpec(
                num_scalar_prefetch=0, grid=(B, n_s),
                in_specs=[tok_spec, row_h, row_h, w_qkv_spec, b_qkv_spec],
                out_specs=[tok_spec, tok_spec, tok_spec]),
            compiler_params=_cparams(2, vmem_qkv),
        )(hidden, lw["ln1_g"], lw["ln1_b"], lw["w_qkv"], lw["b_qkv"])

        # attention over (batch, head-group); heads merged in-kernel -> (B, S, H)
        ctx = pl.pallas_call(
            functools.partial(attention_kernel, head_dim=HD),
            out_shape=jax.ShapeDtypeStruct((B, S_pad, H), jnp.bfloat16),
            grid_spec=pltpu.PrefetchScalarGridSpec(
                num_scalar_prefetch=0, grid=(B, n_g),
                in_specs=[head_spec, head_spec, head_spec, mask_spec],
                out_specs=head_spec),
            compiler_params=_cparams(2, vmem_attn),
        )(q, k, v, ext_mask)

        # output projection + residual + pre-norm FFN + residual
        hidden = pl.pallas_call(
            attn_out_ffn_kernel,
            out_shape=jax.ShapeDtypeStruct((B, S_pad, H), jnp.bfloat16),
            grid_spec=pltpu.PrefetchScalarGridSpec(
                num_scalar_prefetch=0, grid=(B, n_s),
                in_specs=[tok_spec, tok_spec, wo_spec, row_h, row_h, row_h,
                          w1_spec, b1_spec, w2_spec, row_h],
                out_specs=tok_spec),
            compiler_params=_cparams(2, vmem_ffn),
        )(hidden, ctx, lw["wo"], lw["bo"], lw["ln2_g"], lw["ln2_b"],
          lw["w1"], lw["b1"], lw["w2"], lw["b2"])

    last_hidden = hidden[:, :S, :].astype(jnp.float32)
    cls = last_hidden[:, 0, :]
    # Pooler: a (B, H) matmul is far below one (8,128) tile — left to XLA.
    pooled = jnp.tanh(cls @ prepped["pooler_w"].T + prepped["pooler_b"])

    return {"last_hidden_state": last_hidden, "pooler_output": pooled}


# --------------------------------------------------------------------------- params
def init_params(key, *, vocab=100, type_vocab=2, max_pos=16,
                H=32, NH=4, I=64, L=2, std=0.02):
    keys = iter(jax.random.split(key, 64))

    def normal(shape):
        return std * jax.random.normal(next(keys), shape, jnp.float32)

    params = dict(
        num_heads=NH,
        word_embeddings=normal((vocab, H)),
        position_embeddings=normal((max_pos, H)),
        token_type_embeddings=normal((type_vocab, H)),
        emb_ln_g=jnp.ones((1, H), jnp.float32),
        emb_ln_b=jnp.zeros((1, H), jnp.float32),
        pooler_w=normal((H, H)),
        pooler_b=jnp.zeros((1, H), jnp.float32),
        layers=[],
    )
    for _ in range(L):
        params["layers"].append(dict(
            ln1_g=jnp.ones((1, H), jnp.float32), ln1_b=jnp.zeros((1, H), jnp.float32),
            wq=normal((H, H)), bq=jnp.zeros((1, H), jnp.float32),
            wk=normal((H, H)), bk=jnp.zeros((1, H), jnp.float32),
            wv=normal((H, H)), bv=jnp.zeros((1, H), jnp.float32),
            wo=normal((H, H)), bo=jnp.zeros((1, H), jnp.float32),
            ln2_g=jnp.ones((1, H), jnp.float32), ln2_b=jnp.zeros((1, H), jnp.float32),
            w1=normal((I, H)), b1=jnp.zeros((1, I), jnp.float32),
            w2=normal((H, I)), b2=jnp.zeros((1, H), jnp.float32),
        ))
    return params


# --------------------------------------------------------------------------- main
if __name__ == "__main__":
    key = jax.random.PRNGKey(0)
    pkey, ikey = jax.random.split(key)
    params = init_params(pkey)                       # H=32, 4 heads, I=64, 2 layers
    prepped = prepare_params(params)                 # one-time weight prep (hoisted)
    input_ids = jax.random.randint(ikey, (2, 8), 0, 100, dtype=jnp.int32)

    out = medical_adapter_forward(prepped, input_ids)
    jax.block_until_ready(out)

    assert out["last_hidden_state"].shape == (2, 8, 32)
    assert out["pooler_output"].shape == (2, 32)
    assert jnp.all(jnp.isfinite(out["last_hidden_state"]))
    assert jnp.all(jnp.isfinite(out["pooler_output"]))
    print("KERNEL_OK")
</pallas_src>

<mosaic_0001>
module attributes {stable_mosaic.version = 11 : i64} {
  func.func @copy_kernel(%arg0: i32, %arg1: memref<8x128xf32, #tpu.memory_space<vmem>>, %arg2: memref<8x128xf32, #tpu.memory_space<vmem>>) attributes {dimension_semantics = [#tpu.dimension_semantics<arbitrary>], iteration_bounds = array<i64: 2>, scalar_prefetch = 0 : i64, scratch_operands = 0 : i64, tpu.core_type = #tpu.core_type<tc>, window_params = [{pipeline_mode = #tpu.pipeline_mode<synchronous>, transform_indices = @transform_0, window_bounds = array<i64: 8, 128>}, {pipeline_mode = #tpu.pipeline_mode<synchronous>, transform_indices = @transform_1, window_bounds = array<i64: 8, 128>}]} {
    %c0 = arith.constant 0 : index
    %c0_0 = arith.constant 0 : index
    %0 = vector.load %arg1[%c0, %c0_0] : memref<8x128xf32, #tpu.memory_space<vmem>>, vector<8x128xf32>
    %c0_1 = arith.constant 0 : index
    %c0_2 = arith.constant 0 : index
    %1 = vector.load %arg2[%c0_1, %c0_2] : memref<8x128xf32, #tpu.memory_space<vmem>>, vector<8x128xf32>
    tpu.vector_store %arg2[%c0_1, %c0_2], %0 {strides = array<i32>} : memref<8x128xf32, #tpu.memory_space<vmem>>, vector<8x128xf32>,
    return
  }
  func.func @transform_0(%arg0: i32) -> (i32, i32) {
    %c0_i32 = arith.constant 0 : i32
    %c0_i32_0 = arith.constant 0 : i32
    %c0_i32_1 = arith.constant 0 : i32
    return %c0_i32, %c0_i32_0 : i32, i32
  }
  func.func @transform_1(%arg0: i32) -> (i32, i32) {
    %c0_i32 = arith.constant 0 : i32
    %c0_i32_0 = arith.constant 0 : i32
    %c0_i32_1 = arith.constant 0 : i32
    return %c0_i32, %c0_i32_0 : i32, i32
  }
}

module attributes {stable_mosaic.version = 11 : i64} {
  func.func @embed_ln_kernel(%arg0: i32, %arg1: i32, %arg2: memref<1x8x32xbf16, #tpu.memory_space<vmem>>, %arg3: memref<1x32xf32, #tpu.memory_space<vmem>>, %arg4: memref<1x32xf32, #tpu.memory_space<vmem>>, %arg5: memref<1x8x32xbf16, #tpu.memory_space<vmem>>) attributes {dimension_semantics = [#tpu.dimension_semantics<parallel>, #tpu.dimension_semantics<parallel>], iteration_bounds = array<i64: 2, 1>, scalar_prefetch = 0 : i64, scratch_operands = 0 : i64, tpu.core_type = #tpu.core_type<tc>, window_params = [{transform_indices = @transform_0, window_bounds = array<i64: 1, 8, 32>}, {pipeline_mode = #tpu.pipeline_mode<synchronous>, transform_indices = @transform_1, window_bounds = array<i64: 1, 32>}, {pipeline_mode = #tpu.pipeline_mode<synchronous>, transform_indices = @transform_2, window_bounds = array<i64: 1, 32>}, {transform_indices = @transform_3, window_bounds = array<i64: 1, 8, 32>}]} {
    %c0 = arith.constant 0 : index
    %c0_0 = arith.constant 0 : index
    %c0_1 = arith.constant 0 : index
    %0 = vector.load %arg2[%c0, %c0_0, %c0_1] : memref<1x8x32xbf16, #tpu.memory_space<vmem>>, vector<1x8x32xbf16>
    %1 = vector.shape_cast %0 : vector<1x8x32xbf16> to vector<8x32xbf16>
    %2 = arith.extf %1 : vector<8x32xbf16> to vector<8x32xf32>
    %c0_2 = arith.constant 0 : index
    %c0_3 = arith.constant 0 : index
    %3 = vector.load %arg3[%c0_2, %c0_3] : memref<1x32xf32, #tpu.memory_space<vmem>>, vector<1x32xf32>
    %c0_4 = arith.constant 0 : index
    %c0_5 = arith.constant 0 : index
    %4 = vector.load %arg4[%c0_4, %c0_5] : memref<1x32xf32, #tpu.memory_space<vmem>>, vector<1x32xf32>
    %cst = arith.constant dense<0.000000e+00> : vector<8xf32>
    %5 = vector.multi_reduction <add>, %2, %cst [1] : vector<8x32xf32> to vector<8xf32>
    %6 = vector.shape_cast %5 : vector<8xf32> to vector<8x1xf32>
    %cst_6 = arith.constant 3.200000e+01 : f32
    %7 = vector.broadcast %cst_6 : f32 to vector<8x1xf32>
    %8 = arith.divf %6, %7 : vector<8x1xf32>
    %9 = vector.broadcast %8 : vector<8x1xf32> to vector<8x32xf32>
    %10 = arith.subf %2, %9 : vector<8x32xf32>
    %11 = arith.mulf %10, %10 : vector<8x32xf32>
    %cst_7 = arith.constant dense<0.000000e+00> : vector<8xf32>
    %12 = vector.multi_reduction <add>, %11, %cst_7 [1] : vector<8x32xf32> to vector<8xf32>
    %13 = vector.shape_cast %12 : vector<8xf32> to vector<8x1xf32>
    %cst_8 = arith.constant 3.200000e+01 : f32
    %14 = vector.broadcast %cst_8 : f32 to vector<8x1xf32>
    %15 = arith.divf %13, %14 : vector<8x1xf32>
    %16 = vector.broadcast %8 : vector<8x1xf32> to vector<8x32xf32>
    %17 = arith.subf %2, %16 : vector<8x32xf32>
    %cst_9 = arith.constant 9.99999996E-13 : f32
    %18 = vector.broadcast %cst_9 : f32 to vector<8x1xf32>
    %19 = arith.addf %15, %18 : vector<8x1xf32>
    %20 = math.rsqrt %19 : vector<8x1xf32>
    %21 = vector.broadcast %20 : vector<8x1xf32> to vector<8x32xf32>
    %22 = arith.mulf %17, %21 : vector<8x32xf32>
    %23 = vector.broadcast %3 : vector<1x32xf32> to vector<8x32xf32>
    %24 = arith.mulf %22, %23 : vector<8x32xf32>
    %25 = vector.broadcast %4 : vector<1x32xf32> to vector<8x32xf32>
    %26 = arith.addf %24, %25 : vector<8x32xf32>
    %27 = arith.truncf %26 : vector<8x32xf32> to vector<8x32xbf16>
    %c0_10 = arith.constant 0 : index
    %c0_11 = arith.constant 0 : index
    %c0_12 = arith.constant 0 : index
    %28 = vector.load %arg5[%c0_10, %c0_11, %c0_12] : memref<1x8x32xbf16, #tpu.memory_space<vmem>>, vector<1x8x32xbf16>
    %29 = vector.shape_cast %28 : vector<1x8x32xbf16> to vector<8x32xbf16>
    %30 = vector.shape_cast %27 : vector<8x32xbf16> to vector<1x8x32xbf16>
    tpu.vector_store %arg5[%c0_10, %c0_11, %c0_12], %30 {strides = array<i32>} : memref<1x8x32xbf16, #tpu.memory_space<vmem>>, vector<1x8x32xbf16>,
    return
  }
  func.func @transform_0(%arg0: i32, %arg1: i32) -> (i32, i32, i32) {
    %c0_i32 = arith.constant 0 : i32
    %c0_i32_0 = arith.constant 0 : i32
    return %arg0, %arg1, %c0_i32 : i32, i32, i32
  }
  func.func @transform_1(%arg0: i32, %arg1: i32) -> (i32, i32) {
    %c0_i32 = arith.constant 0 : i32
    %c0_i32_0 = arith.constant 0 : i32
    %c0_i32_1 = arith.constant 0 : i32
    return %c0_i32, %c0_i32_0 : i32, i32
  }
  func.func @transform_2(%arg0: i32, %arg1: i32) -> (i32, i32) {
    %c0_i32 = arith.constant 0 : i32
    %c0_i32_0 = arith.constant 0 : i32
    %c0_i32_1 = arith.constant 0 : i32
    return %c0_i32, %c0_i32_0 : i32, i32
  }
  func.func @transform_3(%arg0: i32, %arg1: i32) -> (i32, i32, i32) {
    %c0_i32 = arith.constant 0 : i32
    %c0_i32_0 = arith.constant 0 : i32
    return %arg0, %arg1, %c0_i32 : i32, i32, i32
  }
}

</mosaic_0001>

<llo_original>
// kernel: tpu_custom_call.1
$region0: #{tpu_custom_call.1}
  #allocation0 [shape = 'u32[]', space=smem, size = 0x4, offset = 0x4, fixed_abs, tag = 'smem constant byte address 0x4 - core index']
  #allocation1 [shape = 'u32[144,128]{1,0:T(1,128)}', space=vmem, size = 0x12000, scoped, tag = 'internal scratch']
  %s0 = inlined_call_operand.hbm [shape: f32[8,128], index: 0, kind: input, shape index: {}]
  %s1 = inlined_call_operand.hbm [shape: f32[8,128], index: 1, kind: output, shape index: {}]
  %s2 = sld [smem:[#allocation0]]
  $region41: #{tpu_custom_call.1} parent=0
    _
  %s4 = ssub.s32 1, %s2
  %s5 = scalar_select 0, %s4, %s2
  $region1: #{tpu_custom_call.1} parent=0
    #allocation2 [shape = 'u8[4096]{0}', space=vmem, size = 0x1000, scoped, tag = 'input window, operand 0, single buffered']
    #allocation3 [shape = 's32[2]{0}', space=sflag, size = 0x8, scoped, tag = 'scoped memory for tpu_custom_call.1']
    #allocation4 [shape = 's32[2]{0}', space=sflag, size = 0x8, scoped, tag = 'scoped memory for tpu_custom_call.1']
    #allocation5 [shape = 'u8[4096]{0}', space=vmem, size = 0x1000, scoped, tag = 'output window, operand 0, single buffered']
    %6 = vsyncpa [#allocation3], 0
    %7 = vsyncpa [#allocation4], 0
    loop: start=0, step=1, limit=4
    $region2: #{tpu_custom_call.1} parent=1 // loop_pre_header
      _
    $region3: #{tpu_custom_call.1} parent=1 // loop_header
      %s9 = sphi 0, %s13
      %p10 = scmp.ge.s32.totalorder %s9, 4
      %s17 = sphi 0, %s17
      %s19 = sphi 0, %s17
      %s20 = sphi 0, %s19
      %s34 = sphi 0, %s20
      %s38 = sphi 0, %s38
      %s40 = sphi 0, %s38
      %s41 = sphi 0, %s40
      %s55 = sphi 0, %s41
    $region4: #{tpu_custom_call.1} parent=1 // loop_header_branch
      %12 = sbr.rel (%p10) target = $region8
    $region5: #{tpu_custom_call.1} parent=1 // loop_body
      %s14 = ssub.s32 %s9, 1
      %s15 = ssub.s32 %s9, 2
      %s16 = sadd.s32 %s9, 1
      %s18 = sadd.s32 %s17, 1
      %p21 = scmp.eq.s32.totalorder %s9, 1
      %p22 = scmp.ne.s32.totalorder %s17, %s19
      %p23 = scmp.eq.s32.totalorder %s9, 0
      %p24 = por %p22, %p23
      %p25 = scmp.ne.s32.totalorder %s17, %s19
      %p26 = scmp.eq.s32.totalorder %s14, 1
      %p27 = por %p25, %p26
      %p28 = scmp.ne.s32.totalorder %s19, %s20
      %p29 = scmp.eq.s32.totalorder %s14, 0
      %p30 = por %p28, %p29
      %p31 = scmp.ne.s32.totalorder %s19, %s20
      %p32 = scmp.eq.s32.totalorder %s15, 1
      %p33 = por %p31, %p32
      %p35 = scmp.ne.s32.totalorder %s20, %s34
      %p36 = scmp.eq.s32.totalorder %s15, 0
      %p37 = por %p35, %p36
      %s39 = sadd.s32 %s38, 1
      %p42 = scmp.eq.s32.totalorder %s9, 1
      %p43 = scmp.ne.s32.totalorder %s38, %s40
      %p44 = scmp.eq.s32.totalorder %s9, 0
      %p45 = por %p43, %p44
      %p46 = scmp.ne.s32.totalorder %s38, %s40
      %p47 = scmp.eq.s32.totalorder %s14, 1
      %p48 = por %p46, %p47
      %p49 = scmp.ne.s32.totalorder %s40, %s41
      %p50 = scmp.eq.s32.totalorder %s14, 0
      %p51 = por %p49, %p50
      %p52 = scmp.ne.s32.totalorder %s40, %s41
      %p53 = scmp.eq.s32.totalorder %s15, 1
      %p54 = por %p52, %p53
      %p56 = scmp.ne.s32.totalorder %s41, %s55
      %p57 = scmp.eq.s32.totalorder %s15, 0
      %p58 = por %p56, %p57
      %p59 = scmp.le.s32.totalorder 1, %s9
      %p60 = scmp.lt.s32.totalorder %s9, 3
      %p61 = pnand %p59, %p60
      %p62 = pneg %p61
      // Predicated region
      $region9: #{tpu_custom_call.1} parent=5 // pred_check
        _
      $region10: #{tpu_custom_call.1} parent=5 // pred_check_branch
        %64 = sbr.rel (%p61) target = $region12
      $region11: #{tpu_custom_call.1} parent=5 // pred_region
        %s65 = ssub.s32 %s9, 1
        // Predicated region
        $region13: #{tpu_custom_call.1} parent=11 // pred_check
          %p66 = pneg %p30
        $region14: #{tpu_custom_call.1} parent=11 // pred_check_branch
          %68 = sbr.rel (%p66) target = $region16
        $region15: #{tpu_custom_call.1} parent=11 // pred_region
          %s70 = ssub.s32 128, 128
          %71 = vsyncadd [#allocation3], %s70
          %s73 = sshll.u32 [#allocation2], 4
          %s74 = int_to_ptr.vmem [resolvable:$true] %s73
          %76 = dma.hbm_to_vmem [thread:$0]  %s0, 128, %s74, [#allocation3]
        $region16: #{tpu_custom_call.1} parent=11 // pred_fallthru
          _
      $region12: #{tpu_custom_call.1} parent=5 // pred_fallthru
        _
      %p77 = scmp.lt.s32.totalorder %s9, 2
      // Predicated region
      $region17: #{tpu_custom_call.1} parent=5 // pred_check
        %p78 = pneg %p77
      $region18: #{tpu_custom_call.1} parent=5 // pred_check_branch
        %80 = sbr.rel (%p78) target = $region20
      $region19: #{tpu_custom_call.1} parent=5 // pred_region
        _
      $region20: #{tpu_custom_call.1} parent=5 // pred_fallthru
        _
      %p81 = scmp.le.s32.totalorder 1, %s9
      %p82 = scmp.lt.s32.totalorder %s9, 3
      %p83 = pnand %p81, %p82
      %p84 = pneg %p83
      // Predicated region
      $region21: #{tpu_custom_call.1} parent=5 // pred_check
        _
      $region22: #{tpu_custom_call.1} parent=5 // pred_check_branch
        %86 = sbr.rel (%p83) target = $region24
      $region23: #{tpu_custom_call.1} parent=5 // pred_region
        %s87 = ssub.s32 %s9, 1
        // Predicated region
        $region25: #{tpu_custom_call.1} parent=23 // pred_check
          %p88 = pneg %p30
        $region26: #{tpu_custom_call.1} parent=23 // pred_check_branch
          %90 = sbr.rel (%p88) target = $region28
        $region27: #{tpu_custom_call.1} parent=23 // pred_region
          %91 = dma.done [#allocation3], 128
        $region28: #{tpu_custom_call.1} parent=23 // pred_fallthru
          _
        %p92 = pneg %p30
        %p93 = pneg %p27
        %p94 = pneg %p51
        %p95 = pneg %p48
        %v96 = vld [vmem:[#allocation2] sm:$0xff]
        %97 = vst [vmem:[#allocation5] sm:$0xff] %v96
        // Predicated region
        $region29: #{tpu_custom_call.1} parent=23 // pred_check
          %p98 = pneg %p48
        $region30: #{tpu_custom_call.1} parent=23 // pred_check_branch
          %100 = sbr.rel (%p98) target = $region32
        $region31: #{tpu_custom_call.1} parent=23 // pred_region
          %s102 = ssub.s32 128, 128
          %103 = vsyncadd [#allocation4], %s102
          %s105 = sshll.u32 [#allocation5], 4
          %s106 = int_to_ptr.vmem [resolvable:$true] %s105
          %108 = dma.vmem_to_hbm [thread:$0]  %s106, 128, %s1, [#allocation4]
        $region32: #{tpu_custom_call.1} parent=23 // pred_fallthru
          _
        // Predicated region
        $region33: #{tpu_custom_call.1} parent=23 // pred_check
          %p109 = pneg %p48
        $region34: #{tpu_custom_call.1} parent=23 // pred_check_branch
          %111 = sbr.rel (%p109) target = $region36
        $region35: #{tpu_custom_call.1} parent=23 // pred_region
          %112 = dma.done [#allocation4], 128
        $region36: #{tpu_custom_call.1} parent=23 // pred_fallthru
          _
      $region24: #{tpu_custom_call.1} parent=5 // pred_fallthru
        _
      %p113 = scmp.le.s32.totalorder 2, %s9
      // Predicated region
      $region37: #{tpu_custom_call.1} parent=5 // pred_check
        %p114 = pneg %p113
      $region38: #{tpu_custom_call.1} parent=5 // pred_check_branch
        %116 = sbr.rel (%p114) target = $region40
      $region39: #{tpu_custom_call.1} parent=5 // pred_region
        %s117 = ssub.s32 %s9, 2
      $region40: #{tpu_custom_call.1} parent=5 // pred_fallthru
        _
    $region6: #{tpu_custom_call.1} parent=1 // loop_footer
      %s13 = sadd.s32 1, %s9
    $region7: #{tpu_custom_call.1} parent=1 // loop_footer_branch
      %8 = sbr.rel target = $region3
    $region8: #{tpu_custom_call.1} parent=1 // loop_exit
      _
    %118 = vsyncpa [#allocation3], 1
    %s119 = scalar_lea.sflag [#allocation3], 1
    %120 = vsyncpa %s119, 1
    %121 = vsyncpa [#allocation4], 1
    %s122 = scalar_lea.sflag [#allocation4], 1
    %123 = vsyncpa %s122, 1

// kernel: tpu_custom_call.1
$region0: #{tpu_custom_call.1}
  #allocation0 [shape = 'u32[]', space=smem, size = 0x4, offset = 0x4, fixed_abs, tag = 'smem constant byte address 0x4 - core index']
  #allocation1 [shape = 'u32[144,128]{1,0:T(1,128)}', space=vmem, size = 0x12000, scoped, tag = 'internal scratch']
  %s0 = inlined_call_operand.hbm [shape: bf16[2,8,32], index: 0, kind: input, shape index: {}]
  %s1 = inlined_call_operand.vmem [shape: f32[1,32], index: 1, kind: input, shape index: {}]
  %s2 = inlined_call_operand.vmem [shape: f32[1,32], index: 2, kind: input, shape index: {}]
  %s3 = inlined_call_operand.hbm [shape: bf16[2,8,32], index: 3, kind: output, shape index: {}]
  %s4 = sld [smem:[#allocation0]]
  $region49: #{tpu_custom_call.1} parent=0
    _
  %s6 = ssub.s32 1, %s4
  %s7 = scalar_select 0, %s6, %s4
  $region1: #{tpu_custom_call.1} parent=0
    #allocation2 [shape = 'u8[4096]{0}', space=vmem, size = 0x1000, scoped, tag = 'input window, operand 0']
    #allocation3 [shape = 's32[2]{0}', space=sflag, size = 0x8, scoped, tag = 'scoped memory for tpu_custom_call.1']
    #allocation4 [shape = 's32[2]{0}', space=sflag, size = 0x8, scoped, tag = 'scoped memory for tpu_custom_call.1']
    #allocation5 [shape = 'u8[4096]{0}', space=vmem, size = 0x1000, scoped, tag = 'output window, operand 0']
    %8 = vsyncpa [#allocation3], 0
    %s9 = scalar_lea.sflag [#allocation3], 1
    %10 = vsyncpa %s9, 0
    %11 = vsyncpa [#allocation4], 0
    %s12 = scalar_lea.sflag [#allocation4], 1
    %13 = vsyncpa %s12, 0
    loop: start=0, step=1, limit=4
    $region2: #{tpu_custom_call.1} parent=1 // loop_pre_header
      _
    $region3: #{tpu_custom_call.1} parent=1 // loop_header
      %s15 = sphi 0, %s19
      %p16 = scmp.ge.s32.totalorder %s15, 4
      %s22 = sphi 0, %s34
      %s23 = sphi 0, %s30
      %s24 = sphi 0, %s22
      %s25 = sphi 0, %s23
      %s26 = sphi 0, %s24
      %s27 = sphi 0, %s25
      %s39 = sphi 0, %s41
      %s42 = sphi 0, %s39
      %s43 = sphi 0, %s42
      %s59 = sphi 0, %s43
      %s63 = sphi 0, %s63
      %s65 = sphi 0, %s63
      %s66 = sphi 0, %s65
      %s80 = sphi 0, %s66
      %s84 = sphi 0, %s84
      %s86 = sphi 0, %s84
      %s87 = sphi 0, %s86
      %s101 = sphi 0, %s87
      %s109 = sphi 0, %s111
      %s112 = sphi 0, %s109
      %s113 = sphi 0, %s112
      %s129 = sphi 0, %s113
    $region4: #{tpu_custom_call.1} parent=1 // loop_header_branch
      %18 = sbr.rel (%p16) target = $region8
    $region5: #{tpu_custom_call.1} parent=1 // loop_body
      %s20 = ssub.s32 %s15, 1
      %s21 = ssub.s32 %s15, 2
      %s28 = sadd.s32 1, %s23
      %p29 = scmp.ge.s32.totalorder %s28, 1
      %s30 = scalar_select %p29, 0, %s28
      %s31 = sadd.s32 1, %s22
      %s32 = scalar_select %p29, %s31, %s22
      %p33 = scmp.ge.s32.totalorder %s32, 2
      %s34 = scalar_select %p33, 0, %s32
      %s35 = ssub.s32 %s22, %s34
      %s36 = ssub.s32 %s23, %s30
      %s37 = sor.u32 %s35, %s36
      %p38 = scmp.eq.s32.totalorder %s37, 0
      %s40 = sadd.s32 %s39, 1
      %s41 = scalar_select %p38, %s39, %s40
      %p44 = pneg %p38
      %p45 = scmp.eq.s32.totalorder %s15, 1
      %p46 = por %p44, %p45
      %p47 = scmp.ne.s32.totalorder %s39, %s42
      %p48 = scmp.eq.s32.totalorder %s15, 0
      %p49 = por %p47, %p48
      %p50 = scmp.ne.s32.totalorder %s39, %s42
      %p51 = scmp.eq.s32.totalorder %s20, 1
      %p52 = por %p50, %p51
      %p53 = scmp.ne.s32.totalorder %s42, %s43
      %p54 = scmp.eq.s32.totalorder %s20, 0
      %p55 = por %p53, %p54
      %p56 = scmp.ne.s32.totalorder %s42, %s43
      %p57 = scmp.eq.s32.totalorder %s21, 1
      %p58 = por %p56, %p57
      %p60 = scmp.ne.s32.totalorder %s43, %s59
      %p61 = scmp.eq.s32.totalorder %s21, 0
      %p62 = por %p60, %p61
      %s64 = sadd.s32 %s63, 1
      %p67 = scmp.eq.s32.totalorder %s15, 1
      %p68 = scmp.ne.s32.totalorder %s63, %s65
      %p69 = scmp.eq.s32.totalorder %s15, 0
      %p70 = por %p68, %p69
      %p71 = scmp.ne.s32.totalorder %s63, %s65
      %p72 = scmp.eq.s32.totalorder %s20, 1
      %p73 = por %p71, %p72
      %p74 = scmp.ne.s32.totalorder %s65, %s66
      %p75 = scmp.eq.s32.totalorder %s20, 0
      %p76 = por %p74, %p75
      %p77 = scmp.ne.s32.totalorder %s65, %s66
      %p78 = scmp.eq.s32.totalorder %s21, 1
      %p79 = por %p77, %p78
      %p81 = scmp.ne.s32.totalorder %s66, %s80
      %p82 = scmp.eq.s32.totalorder %s21, 0
      %p83 = por %p81, %p82
      %s85 = sadd.s32 %s84, 1
      %p88 = scmp.eq.s32.totalorder %s15, 1
      %p89 = scmp.ne.s32.totalorder %s84, %s86
      %p90 = scmp.eq.s32.totalorder %s15, 0
      %p91 = por %p89, %p90
      %p92 = scmp.ne.s32.totalorder %s84, %s86
      %p93 = scmp.eq.s32.totalorder %s20, 1
      %p94 = por %p92, %p93
      %p95 = scmp.ne.s32.totalorder %s86, %s87
      %p96 = scmp.eq.s32.totalorder %s20, 0
      %p97 = por %p95, %p96
      %p98 = scmp.ne.s32.totalorder %s86, %s87
      %p99 = scmp.eq.s32.totalorder %s21, 1
      %p100 = por %p98, %p99
      %p102 = scmp.ne.s32.totalorder %s87, %s101
      %p103 = scmp.eq.s32.totalorder %s21, 0
      %p104 = por %p102, %p103
      %s105 = ssub.s32 %s22, %s34
      %s106 = ssub.s32 %s23, %s30
      %s107 = sor.u32 %s105, %s106
      %p108 = scmp.eq.s32.totalorder %s107, 0
      %s110 = sadd.s32 %s109, 1
      %s111 = scalar_select %p108, %s109, %s110
      %p114 = pneg %p108
      %p115 = scmp.eq.s32.totalorder %s15, 1
      %p116 = por %p114, %p115
      %p117 = scmp.ne.s32.totalorder %s109, %s112
      %p118 = scmp.eq.s32.totalorder %s15, 0
      %p119 = por %p117, %p118
      %p120 = scmp.ne.s32.totalorder %s109, %s112
      %p121 = scmp.eq.s32.totalorder %s20, 1
      %p122 = por %p120, %p121
      %p123 = scmp.ne.s32.totalorder %s112, %s113
      %p124 = scmp.eq.s32.totalorder %s20, 0
      %p125 = por %p123, %p124
      %p126 = scmp.ne.s32.totalorder %s112, %s113
      %p127 = scmp.eq.s32.totalorder %s21, 1
      %p128 = por %p126, %p127
      %p130 = scmp.ne.s32.totalorder %s113, %s129
      %p131 = scmp.eq.s32.totalorder %s21, 0
      %p132 = por %p130, %p131
      %p133 = scmp.le.s32.totalorder 1, %s15
      %p134 = scmp.lt.s32.totalorder %s15, 3
      %p135 = pnand %p133, %p134
      %p136 = pneg %p135
      // Predicated region
      $region9: #{tpu_custom_call.1} parent=5 // pred_check
        _
      $region10: #{tpu_custom_call.1} parent=5 // pred_check_branch
        %138 = sbr.rel (%p135) target = $region12
      $region11: #{tpu_custom_call.1} parent=5 // pred_region
        %s139 = ssub.s32 %s15, 1
        // Predicated region
        $region13: #{tpu_custom_call.1} parent=11 // pred_check
          %p140 = pneg %p76
        $region14: #{tpu_custom_call.1} parent=11 // pred_check_branch
          %142 = sbr.rel (%p140) target = $region16
        $region15: #{tpu_custom_call.1} parent=11 // pred_region
          _
        $region16: #{tpu_custom_call.1} parent=11 // pred_fallthru
          _
        // Predicated region
        $region17: #{tpu_custom_call.1} parent=11 // pred_check
          %p143 = pneg %p97
        $region18: #{tpu_custom_call.1} parent=11 // pred_check_branch
          %145 = sbr.rel (%p143) target = $region20
        $region19: #{tpu_custom_call.1} parent=11 // pred_region
          _
        $region20: #{tpu_custom_call.1} parent=11 // pred_fallthru
          _
      $region12: #{tpu_custom_call.1} parent=5 // pred_fallthru
        _
      %p146 = scmp.lt.s32.totalorder %s15, 2
      // Predicated region
      $region21: #{tpu_custom_call.1} parent=5 // pred_check
        %p147 = pneg %p146
      $region22: #{tpu_custom_call.1} parent=5 // pred_check_branch
        %149 = sbr.rel (%p147) target = $region24
      $region23: #{tpu_custom_call.1} parent=5 // pred_region
        // Predicated region
        $region25: #{tpu_custom_call.1} parent=23 // pred_check
          %p150 = pneg %p49
        $region26: #{tpu_custom_call.1} parent=23 // pred_check_branch
          %152 = sbr.rel (%p150) target = $region28
        $region27: #{tpu_custom_call.1} parent=23 // pred_region
          %s153 = sand.u32 %s39, 1
          %s154 = scalar_lea.sflag [#allocation3], %s153
          %s155 = sand.u32 %s39, 1
          %s156 = smul.addr %s155, 4
          %s157 = scalar_lea.vmem [#allocation2], %s156
          %s159 = ssub.s32 64, 64
          %160 = vsyncadd %s154, %s159
          %s161 = sadd.s32 %s23, %s22
          %s162 = smul.addr %s161, 64
          %s163 = scalar_lea.hbm %s0, %s162
          %s165 = sshll.u32 %s157, 4
          %s166 = int_to_ptr.vmem [resolvable:$true] %s165
          %168 = dma.hbm_to_vmem [thread:$0]  %s163, 64, %s166, %s154
        $region28: #{tpu_custom_call.1} parent=23 // pred_fallthru
          _
      $region24: #{tpu_custom_call.1} parent=5 // pred_fallthru
        _
      %p169 = scmp.le.s32.totalorder 1, %s15
      %p170 = scmp.lt.s32.totalorder %s15, 3
      %p171 = pnand %p169, %p170
      %p172 = pneg %p171
      // Predicated region
      $region29: #{tpu_custom_call.1} parent=5 // pred_check
        _
      $region30: #{tpu_custom_call.1} parent=5 // pred_check_branch
        %174 = sbr.rel (%p171) target = $region32
      $region31: #{tpu_custom_call.1} parent=5 // pred_region
        %s175 = ssub.s32 %s15, 1
        %s176 = sand.u32 %s42, 1
        %s177 = scalar_lea.sflag [#allocation3], %s176
        %s178 = sand.u32 %s42, 1
        %s179 = smul.addr %s178, 4
        %s180 = scalar_lea.vmem [#allocation2], %s179
        // Predicated region
        $region33: #{tpu_custom_call.1} parent=31 // pred_check
          %p181 = pneg %p55
        $region34: #{tpu_custom_call.1} parent=31 // pred_check_branch
          %183 = sbr.rel (%p181) target = $region36
        $region35: #{tpu_custom_call.1} parent=31 // pred_region
          %184 = dma.done %s177, 64
        $region36: #{tpu_custom_call.1} parent=31 // pred_fallthru
          _
        %s185 = sand.u32 %s42, 1
        %s186 = scalar_lea.sflag [#allocation3], %s185
        %s187 = sand.u32 %s42, 1
        %s188 = smul.addr %s187, 4
        %s189 = scalar_lea.vmem [#allocation2], %s188
        %p190 = pneg %p55
        %p191 = pneg %p52
        %p192 = pneg %p76
        %p193 = pneg %p73
        %p194 = pneg %p97
        %p195 = pneg %p94
        %p196 = pneg %p125
        %p197 = pneg %p122
        %s198 = sand.u32 %s112, 1
        %s199 = scalar_lea.sflag [#allocation4], %s198
        %s200 = sand.u32 %s112, 1
        %s201 = smul.addr %s200, 4
        %s202 = scalar_lea.vmem [#allocation5], %s201
        %v203 = vld [vmem:[%s180] sm:$0xf]
        %v204 = vunpack.c.l.bf16 %v203
        %v205 = vld [vmem:[%s1] sm:$0x1]
        %v206 = vld [vmem:[%s2] sm:$0x1]
        %vm207 = vcmask 261120
        %v208 = vsel %vm207, %v204, 0.0
        %209 = vadd.xlane.f32.xlu0 %v208
        %v210 = vpop.xlane.xlu0 %209
        %v211 = vrcp.pop 32.0
        %v212 = vmul.f32 %v210, %v211
        %v213 = vsub.f32 %v204, %v212
        %v214 = vmul.f32 %v213, %v213
        %v215 = vsel %vm207, %v214, 0.0
        %216 = vadd.xlane.f32.xlu0 %v215
        %v217 = vpop.xlane.xlu0 %216
        %v218 = vmul.f32 %v217, %v211
        %v219 = vadd.f32 %v218, 1e-12
        %v220 = vrsqrt.pop %v219
        %v221 = vmul.f32 %v213, %v220
        %v223 = vlaneseq
        %v224 = vshrl.u32 %v223, 7
        %v225 = vsub.s32 0, %v224
        %v226 = vrot.slane %v205, %v225
        %v228 = vmul.f32 %v221, %v226
        %v230 = vlaneseq
        %v231 = vshrl.u32 %v230, 7
        %v232 = vsub.s32 0, %v231
        %v233 = vrot.slane %v206, %v232
        %v235 = vadd.f32 %v228, %v233
        %v236 = vpack.c.bf16 %v235, %v235
        %vm237 = vcmask 257024
        %238 = vst.msk [vmem:[%s202] sm:$0xf] %vm237, %v236
        %s239 = sand.u32 %s112, 1
        %s240 = scalar_lea.sflag [#allocation4], %s239
        %s241 = sand.u32 %s112, 1
        %s242 = smul.addr %s241, 4
        %s243 = scalar_lea.vmem [#allocation5], %s242
        // Predicated region
        $region37: #{tpu_custom_call.1} parent=31 // pred_check
          %p244 = pneg %p122
        $region38: #{tpu_custom_call.1} parent=31 // pred_check_branch
          %246 = sbr.rel (%p244) target = $region40
        $region39: #{tpu_custom_call.1} parent=31 // pred_region
          %s248 = ssub.s32 64, 64
          %249 = vsyncadd %s240, %s248
          %s250 = sadd.s32 %s25, %s24
          %s251 = smul.addr %s250, 64
          %s252 = scalar_lea.hbm %s3, %s251
          %s254 = sshll.u32 %s243, 4
          %s255 = int_to_ptr.vmem [resolvable:$true] %s254
          %257 = dma.vmem_to_hbm [thread:$0]  %s255, 64, %s252, %s240
        $region40: #{tpu_custom_call.1} parent=31 // pred_fallthru
          _
      $region32: #{tpu_custom_call.1} parent=5 // pred_fallthru
        _
      %p258 = scmp.le.s32.totalorder 2, %s15
      // Predicated region
      $region41: #{tpu_custom_call.1} parent=5 // pred_check
        %p259 = pneg %p258
      $region42: #{tpu_custom_call.1} parent=5 // pred_check_branch
        %261 = sbr.rel (%p259) target = $region44
      $region43: #{tpu_custom_call.1} parent=5 // pred_region
        %s262 = ssub.s32 %s15, 2
        // Predicated region
        $region45: #{tpu_custom_call.1} parent=43 // pred_check
          %p263 = pneg %p128
        $region46: #{tpu_custom_call.1} parent=43 // pred_check_branch
          %265 = sbr.rel (%p263) target = $region48
        $region47: #{tpu_custom_call.1} parent=43 // pred_region
          %s266 = sand.u32 %s113, 1
          %s267 = scalar_lea.sflag [#allocation4], %s266
          %s268 = sand.u32 %s113, 1
          %s269 = smul.addr %s268, 4
          %s270 = scalar_lea.vmem [#allocation5], %s269
          %271 = dma.done %s267, 64
        $region48: #{tpu_custom_call.1} parent=43 // pred_fallthru
          _
      $region44: #{tpu_custom_call.1} parent=5 // pred_fallthru
        _
    $region6: #{tpu_custom_call.1} parent=1 // loop_footer
      %s19 = sadd.s32 1, %s15
    $region7: #{tpu_custom_call.1} parent=1 // loop_footer_branch
      %14 = sbr.rel target = $region3
    $region8: #{tpu_custom_call.1} parent=1 // loop_exit
      _
    %272 = vsyncpa [#allocation3], 1
    %s273 = scalar_lea.sflag [#allocation3], 1
    %274 = vsyncpa %s273, 1
    %275 = vsyncpa [#allocation4], 1
    %s276 = scalar_lea.sflag [#allocation4], 1
    %277 = vsyncpa %s276, 1

</llo_original>
